<compile_context>
chip_gen: v6e
topology: v6e:2x2x1
jax: 0.10.0
libtpu: 0.0.40
codegen_flags: <defaults>
</compile_context>

<pallas_src>
import functools

import jax
import jax.numpy as jnp
from jax.experimental import pallas as pl
from jax.experimental.pallas import tpu as pltpu


def _dino_loss_kernel(s_ref, t_ref, out_ref, m_sc, l_sc, dot_sc, tsum_sc, *,
                      inv_temp, inv_b, n_teacher, assume_teacher_normalized):
    """Batch tile b (grid axis 0, parallel), feature tile k (axis 1, reduction).

    s_ref:   (n_s, tb, Dt)  all student views, batch tile b, feature tile k
    t_ref:   (n_t, tb, Dt)  all teacher views, same tile
    out_ref: (8, 128)       per-batch-tile partial loss (scalar, lane-dense)
    m_sc:    (n_s, tb, 1)   running row max of s/temp           (online softmax)
    l_sc:    (n_s, tb, 1)   running rescaled sum exp(s/temp - m) (online softmax)
    dot_sc:  (n_s, tb, 1)   running sum_d (sum_t t) * (s/temp)
    tsum_sc: (tb, 1)        running sum_d sum_t t  (skipped when the teacher is
                            known to be row-normalized)
    """
    k = pl.program_id(1)
    nk = pl.num_programs(1)

    @pl.when(k == 0)
    def _init():
        m_sc[...] = jnp.full_like(m_sc, -jnp.inf)
        l_sc[...] = jnp.zeros_like(l_sc)
        dot_sc[...] = jnp.zeros_like(dot_sc)
        if not assume_teacher_normalized:
            tsum_sc[...] = jnp.zeros_like(tsum_sc)

    s = s_ref[...].astype(jnp.float32) * inv_temp              # (n_s, tb, Dt)
    t_sum = jnp.sum(t_ref[...].astype(jnp.float32), axis=0)    # (tb, Dt)

    # Online log-softmax statistics, per student view / per row (EUP exp is the
    # only full-width transcendental; computed once per student element).
    m_old = m_sc[...]
    m_new = jnp.maximum(m_old, jnp.max(s, axis=-1, keepdims=True))  # (n_s, tb, 1)
    l_sc[...] = (l_sc[...] * jnp.exp(m_old - m_new)
                 + jnp.sum(jnp.exp(s - m_new), axis=-1, keepdims=True))
    m_sc[...] = m_new

    # Loss is linear in the teacher -> sum teacher views first; the lane (XLU)
    # reduction happens per tile so the carried state stays one lane wide and
    # no full-width accumulator stores are issued.
    dot_sc[...] += jnp.sum(t_sum[None, :, :] * s, axis=-1, keepdims=True)
    if not assume_teacher_normalized:
        tsum_sc[...] += jnp.sum(t_sum, axis=-1, keepdims=True)

    @pl.when(k == nk - 1)
    def _finalize():
        # c[i,b] = logsumexp_d( s_i[b]/temp )
        c = m_sc[...] + jnp.log(l_sc[...])                      # (n_s, tb, 1)
        # sum_t sum_d t*log_softmax(s/T) = sum_d (sum_t t)*(s/T) - c*sum_d sum_t t
        if assume_teacher_normalized:
            tsum = jnp.float32(n_teacher)
        else:
            tsum = tsum_sc[...][None, :, :]                     # (1, tb, 1)
        per_sample = dot_sc[...] - c * tsum                     # (n_s, tb, 1)
        partial = -jnp.sum(per_sample) * inv_b
        out_ref[...] = jnp.broadcast_to(partial.astype(jnp.float32), out_ref.shape)


def _vmem_capacity_bytes():
    try:
        cap = getattr(pltpu.get_tpu_info(), "vmem_capacity_bytes", None)
        if cap:
            return int(cap)
    except Exception:
        pass
    return 64 << 20  # conservative default: v7x per-core VMEM


def _choose_batch_tile(B):
    # Split the batch in two when legal so the leading "parallel" grid axis can
    # shard across v7x's two TensorCores (harmless on 1-TC chips).
    if B % 16 == 0:
        return B // 2
    return B


def _choose_d_tile(n_s, n_t, tb, D, s_bytes, t_bytes, budget_bytes):
    """Widest feature tile whose double-buffered input blocks fit the budget.

    Carried state is one lane wide, so only the input blocks matter."""
    def cost(dt):
        return 2 * (n_s * s_bytes + n_t * t_bytes) * tb * dt   # 2-deep pipeline

    divisors = [d for d in range(128, D, 128) if D % d == 0]
    cands = [D] + sorted(divisors, reverse=True)
    # Prefer wide (>= 2048-lane) tiles for efficient HBM bursts.
    preferred = [d for d in cands if d >= min(2048, D)]
    for d in preferred:
        if cost(d) <= budget_bytes:
            return d
    for d in cands:
        if cost(d) <= budget_bytes:
            return d
    return cands[-1]   # graceful fallback (smallest legal tile)


def dino_loss(student_outputs, teacher_outputs, *, student_temp=0.1,
              tb=None, d_tile=None, assume_teacher_normalized=False):
    """student_outputs: (n_s, B, D), teacher_outputs: (n_t, B, D) -> scalar f32.

    Matches PyTorch DINOLoss.forward: the teacher list is already
    softmaxed/centered outside, and every (student, teacher) pair contributes
    (the module does not skip same-view pairs).
    """
    n_s, B, D = student_outputs.shape
    n_t, Bt, Dt = teacher_outputs.shape
    assert (Bt, Dt) == (B, D)

    s_bytes = jnp.dtype(student_outputs.dtype).itemsize
    t_bytes = jnp.dtype(teacher_outputs.dtype).itemsize

    cap = _vmem_capacity_bytes()
    # Generation-aware budget: ~3/4 of physical per-core VMEM, capped at 96 MiB
    # (v5e/v6e: 96 MiB of 128; v7x: 48 MiB of 64).
    budget = min((cap * 3) // 4, 96 << 20)

    if tb is None:
        tb = _choose_batch_tile(B)
    assert B % tb == 0 and (tb == B or tb % 8 == 0), (B, tb)
    if d_tile is None:
        d_tile = _choose_d_tile(n_s, n_t, tb, D, s_bytes, t_bytes, budget)
    assert D % d_tile == 0 and (d_tile == D or d_tile % 128 == 0), (D, d_tile)
    n_b = B // tb
    n_k = D // d_tile

    # Scoped-VMEM limit sized to the buffers (+ headroom), never below what the
    # buffers actually need, never above physical per-core VMEM.
    block_bytes = (n_s * s_bytes + n_t * t_bytes) * tb * d_tile
    scratch_bytes = (3 * n_s + 1) * tb * 128 * 4        # lane-padded (.., 1) f32
    need = 2 * block_bytes + scratch_bytes + 2 * 8 * 128 * 4
    vmem_limit = int(min(max(need + (8 << 20), 32 << 20), cap))
    vmem_limit = int(max(vmem_limit, min(need + (1 << 20), cap)))

    kernel = functools.partial(
        _dino_loss_kernel,
        inv_temp=float(1.0 / student_temp),
        inv_b=float(1.0 / B),
        n_teacher=n_t,
        assume_teacher_normalized=assume_teacher_normalized,
    )

    partials = pl.pallas_call(
        kernel,
        out_shape=jax.ShapeDtypeStruct((n_b, 8, 128), jnp.float32),
        grid_spec=pltpu.PrefetchScalarGridSpec(
            num_scalar_prefetch=0,
            grid=(n_b, n_k),
            in_specs=[
                # all student views, batch tile b, feature tile k
                pl.BlockSpec((n_s, tb, d_tile), lambda b, k: (0, b, k)),
                # all teacher views, same tile (fetched exactly once)
                pl.BlockSpec((n_t, tb, d_tile), lambda b, k: (0, b, k)),
            ],
            out_specs=pl.BlockSpec((None, 8, 128), lambda b, k: (b, 0, 0)),
            scratch_shapes=[
                pltpu.VMEM((n_s, tb, 1), jnp.float32),   # m_sc
                pltpu.VMEM((n_s, tb, 1), jnp.float32),   # l_sc
                pltpu.VMEM((n_s, tb, 1), jnp.float32),   # dot_sc
                pltpu.VMEM((tb, 1), jnp.float32),        # tsum_sc
            ],
        ),
        compiler_params=pltpu.CompilerParams(
            dimension_semantics=("parallel", "arbitrary"),
            vmem_limit_bytes=vmem_limit,
        ),
    )(student_outputs, teacher_outputs)

    # Tiny (n_b,) reduction of the per-batch-tile partials in plain JAX.
    return jnp.sum(partials[:, 0, 0])


def dino_loss_ref(student_outputs, teacher_outputs, *, student_temp=0.1):
    """Pure-JAX reference mirroring the PyTorch forward loop (f32 math)."""
    total = jnp.float32(0.0)
    for si in range(student_outputs.shape[0]):
        lsm = jax.nn.log_softmax(
            student_outputs[si].astype(jnp.float32) / student_temp, axis=-1)
        for ti in range(teacher_outputs.shape[0]):
            loss = jnp.sum(teacher_outputs[ti].astype(jnp.float32) * lsm, axis=-1)
            total = total - jnp.mean(loss)
    return total


if __name__ == "__main__":
    key = jax.random.PRNGKey(0)
    k_s, k_t = jax.random.split(key, 2)

    # Small deterministic shapes; chosen so both the batch-parallel axis and
    # the streamed online-softmax path are exercised.
    n_s, n_t, B, D = 3, 2, 16, 512
    student_temp, teacher_temp = 0.1, 0.07

    student_logits = jax.random.normal(k_s, (n_s, B, D), dtype=jnp.float32)
    teacher_logits = jax.random.normal(k_t, (n_t, B, D), dtype=jnp.float32)

    # Emulate softmax_center_teacher preprocessing (center buffer = zeros) in
    # plain JAX glue, exactly as the module does before calling forward().
    # TODO(synk): center EMA update / sinkhorn_knopp_teacher are torch.distributed
    # preprocessing outside the forward hot path; not part of this kernel.
    center = jnp.zeros((1, D), dtype=jnp.float32)
    teacher = jax.nn.softmax((teacher_logits - center) / teacher_temp, axis=-1)

    # Student logits in bf16 (halves their HBM traffic); teacher kept in f32
    # (softmaxed probabilities are tiny -> bf16 would cost loss fidelity).
    student_bf16 = student_logits.astype(jnp.bfloat16)

    ref = jax.block_until_ready(
        dino_loss_ref(student_bf16, teacher, student_temp=student_temp))

    # 1) Explicit small tiles: 2 batch tiles (parallel axis) x 4 feature tiles
    #    (streamed online-softmax path).
    loss_stream = jax.block_until_ready(
        dino_loss(student_bf16, teacher, student_temp=student_temp,
                  tb=8, d_tile=128))
    # 2) Auto tiles (d_tile == D -> single-pass, rescale path degenerates).
    loss_auto = jax.block_until_ready(
        dino_loss(student_bf16, teacher, student_temp=student_temp))
    # 3) Flag-gated fast path relying on the teacher being row-normalized.
    loss_norm = jax.block_until_ready(
        dino_loss(student_bf16, teacher, student_temp=student_temp,
                  assume_teacher_normalized=True))

    assert jnp.allclose(loss_stream, ref, rtol=1e-4, atol=1e-3), (loss_stream, ref)
    assert jnp.allclose(loss_auto, ref, rtol=1e-4, atol=1e-3), (loss_auto, ref)
    assert jnp.allclose(loss_norm, ref, rtol=1e-4, atol=1e-3), (loss_norm, ref)
    print("KERNEL_OK")
</pallas_src>

<mosaic_0001>
module attributes {stable_mosaic.version = 11 : i64} {
  func.func @_dino_loss_kernel(%arg0: i32, %arg1: i32, %arg2: memref<3x8x128xbf16, #tpu.memory_space<vmem>>, %arg3: memref<2x8x128xf32, #tpu.memory_space<vmem>>, %arg4: memref<1x8x128xf32, #tpu.memory_space<vmem>>, %arg5: memref<3x8x1xf32, #tpu.memory_space<vmem>>, %arg6: memref<3x8x1xf32, #tpu.memory_space<vmem>>, %arg7: memref<3x8x1xf32, #tpu.memory_space<vmem>>, %arg8: memref<8x1xf32, #tpu.memory_space<vmem>>) attributes {dimension_semantics = [#tpu.dimension_semantics<parallel>, #tpu.dimension_semantics<arbitrary>], iteration_bounds = array<i64: 2, 4>, scalar_prefetch = 0 : i64, scratch_operands = 4 : i64, tpu.core_type = #tpu.core_type<tc>, window_params = [{transform_indices = @transform_0, window_bounds = array<i64: 3, 8, 128>}, {transform_indices = @transform_1, window_bounds = array<i64: 2, 8, 128>}, {transform_indices = @transform_2, window_bounds = array<i64: 1, 8, 128>}]} {
    %c0_i32 = arith.constant 0 : i32
    %0 = arith.cmpi eq, %arg1, %c0_i32 : i32
    %1 = arith.extui %0 : i1 to i32
    %c0_i32_0 = arith.constant 0 : i32
    %2 = arith.cmpi ne, %1, %c0_i32_0 : i32
    scf.if %2 {
      %cst_34 = arith.constant 0xFF800000 : f32
      %41 = vector.broadcast %cst_34 : f32 to vector<3x8x1xf32>
      %c0_35 = arith.constant 0 : index
      %c0_36 = arith.constant 0 : index
      %c0_37 = arith.constant 0 : index
      %42 = vector.load %arg5[%c0_35, %c0_36, %c0_37] : memref<3x8x1xf32, #tpu.memory_space<vmem>>, vector<3x8x1xf32>
      tpu.vector_store %arg5[%c0_35, %c0_36, %c0_37], %41 {strides = array<i32>} : memref<3x8x1xf32, #tpu.memory_space<vmem>>, vector<3x8x1xf32>,
      %cst_38 = arith.constant 0.000000e+00 : f32
      %43 = vector.broadcast %cst_38 : f32 to vector<3x8x1xf32>
      %c0_39 = arith.constant 0 : index
      %c0_40 = arith.constant 0 : index
      %c0_41 = arith.constant 0 : index
      %44 = vector.load %arg6[%c0_39, %c0_40, %c0_41] : memref<3x8x1xf32, #tpu.memory_space<vmem>>, vector<3x8x1xf32>
      tpu.vector_store %arg6[%c0_39, %c0_40, %c0_41], %43 {strides = array<i32>} : memref<3x8x1xf32, #tpu.memory_space<vmem>>, vector<3x8x1xf32>,
      %cst_42 = arith.constant 0.000000e+00 : f32
      %45 = vector.broadcast %cst_42 : f32 to vector<3x8x1xf32>
      %c0_43 = arith.constant 0 : index
      %c0_44 = arith.constant 0 : index
      %c0_45 = arith.constant 0 : index
      %46 = vector.load %arg7[%c0_43, %c0_44, %c0_45] : memref<3x8x1xf32, #tpu.memory_space<vmem>>, vector<3x8x1xf32>
      tpu.vector_store %arg7[%c0_43, %c0_44, %c0_45], %45 {strides = array<i32>} : memref<3x8x1xf32, #tpu.memory_space<vmem>>, vector<3x8x1xf32>,
      %cst_46 = arith.constant 0.000000e+00 : f32
      %47 = vector.broadcast %cst_46 : f32 to vector<8x1xf32>
      %c0_47 = arith.constant 0 : index
      %c0_48 = arith.constant 0 : index
      %48 = vector.load %arg8[%c0_47, %c0_48] : memref<8x1xf32, #tpu.memory_space<vmem>>, vector<8x1xf32>
      tpu.vector_store %arg8[%c0_47, %c0_48], %47 {strides = array<i32>} : memref<8x1xf32, #tpu.memory_space<vmem>>, vector<8x1xf32>,
    } else {
    }
    %c0 = arith.constant 0 : index
    %c0_1 = arith.constant 0 : index
    %c0_2 = arith.constant 0 : index
    %3 = vector.load %arg2[%c0, %c0_1, %c0_2] : memref<3x8x128xbf16, #tpu.memory_space<vmem>>, vector<3x8x128xbf16>
    %4 = arith.extf %3 : vector<3x8x128xbf16> to vector<3x8x128xf32>
    %cst = arith.constant 1.000000e+01 : f32
    %5 = vector.broadcast %cst : f32 to vector<3x8x128xf32>
    %6 = arith.mulf %4, %5 : vector<3x8x128xf32>
    %c0_3 = arith.constant 0 : index
    %c0_4 = arith.constant 0 : index
    %c0_5 = arith.constant 0 : index
    %7 = vector.load %arg3[%c0_3, %c0_4, %c0_5] : memref<2x8x128xf32, #tpu.memory_space<vmem>>, vector<2x8x128xf32>
    %cst_6 = arith.constant dense<0.000000e+00> : vector<8x128xf32>
    %8 = vector.multi_reduction <add>, %7, %cst_6 [0] : vector<2x8x128xf32> to vector<8x128xf32>
    %c0_7 = arith.constant 0 : index
    %c0_8 = arith.constant 0 : index
    %c0_9 = arith.constant 0 : index
    %9 = vector.load %arg5[%c0_7, %c0_8, %c0_9] : memref<3x8x1xf32, #tpu.memory_space<vmem>>, vector<3x8x1xf32>
    %cst_10 = arith.constant dense<0xFF800000> : vector<3x8xf32>
    %10 = vector.multi_reduction <maximumf>, %6, %cst_10 [2] : vector<3x8x128xf32> to vector<3x8xf32>
    %11 = vector.shape_cast %10 : vector<3x8xf32> to vector<3x8x1xf32>
    %12 = arith.maximumf %9, %11 : vector<3x8x1xf32>
    %c0_11 = arith.constant 0 : index
    %c0_12 = arith.constant 0 : index
    %c0_13 = arith.constant 0 : index
    %13 = vector.load %arg6[%c0_11, %c0_12, %c0_13] : memref<3x8x1xf32, #tpu.memory_space<vmem>>, vector<3x8x1xf32>
    %14 = arith.subf %9, %12 : vector<3x8x1xf32>
    %15 = math.exp %14 : vector<3x8x1xf32>
    %16 = arith.mulf %13, %15 : vector<3x8x1xf32>
    %17 = vector.broadcast %12 : vector<3x8x1xf32> to vector<3x8x128xf32>
    %18 = arith.subf %6, %17 : vector<3x8x128xf32>
    %19 = math.exp %18 : vector<3x8x128xf32>
    %cst_14 = arith.constant dense<0.000000e+00> : vector<3x8xf32>
    %20 = vector.multi_reduction <add>, %19, %cst_14 [2] : vector<3x8x128xf32> to vector<3x8xf32>
    %21 = vector.shape_cast %20 : vector<3x8xf32> to vector<3x8x1xf32>
    %22 = arith.addf %16, %21 : vector<3x8x1xf32>
    %c0_15 = arith.constant 0 : index
    %c0_16 = arith.constant 0 : index
    %c0_17 = arith.constant 0 : index
    %23 = vector.load %arg6[%c0_15, %c0_16, %c0_17] : memref<3x8x1xf32, #tpu.memory_space<vmem>>, vector<3x8x1xf32>
    tpu.vector_store %arg6[%c0_15, %c0_16, %c0_17], %22 {strides = array<i32>} : memref<3x8x1xf32, #tpu.memory_space<vmem>>, vector<3x8x1xf32>,
    %c0_18 = arith.constant 0 : index
    %c0_19 = arith.constant 0 : index
    %c0_20 = arith.constant 0 : index
    %24 = vector.load %arg5[%c0_18, %c0_19, %c0_20] : memref<3x8x1xf32, #tpu.memory_space<vmem>>, vector<3x8x1xf32>
    tpu.vector_store %arg5[%c0_18, %c0_19, %c0_20], %12 {strides = array<i32>} : memref<3x8x1xf32, #tpu.memory_space<vmem>>, vector<3x8x1xf32>,
    %c0_21 = arith.constant 0 : index
    %c0_22 = arith.constant 0 : index
    %c0_23 = arith.constant 0 : index
    %25 = vector.load %arg7[%c0_21, %c0_22, %c0_23] : memref<3x8x1xf32, #tpu.memory_space<vmem>>, vector<3x8x1xf32>
    %26 = vector.shape_cast %8 : vector<8x128xf32> to vector<1x8x128xf32>
    %27 = vector.broadcast %26 : vector<1x8x128xf32> to vector<3x8x128xf32>
    %28 = arith.mulf %27, %6 : vector<3x8x128xf32>
    %cst_24 = arith.constant dense<0.000000e+00> : vector<3x8xf32>
    %29 = vector.multi_reduction <add>, %28, %cst_24 [2] : vector<3x8x128xf32> to vector<3x8xf32>
    %30 = vector.shape_cast %29 : vector<3x8xf32> to vector<3x8x1xf32>
    %31 = arith.addf %25, %30 : vector<3x8x1xf32>
    %c0_25 = arith.constant 0 : index
    %c0_26 = arith.constant 0 : index
    %c0_27 = arith.constant 0 : index
    %32 = vector.load %arg7[%c0_25, %c0_26, %c0_27] : memref<3x8x1xf32, #tpu.memory_space<vmem>>, vector<3x8x1xf32>
    tpu.vector_store %arg7[%c0_25, %c0_26, %c0_27], %31 {strides = array<i32>} : memref<3x8x1xf32, #tpu.memory_space<vmem>>, vector<3x8x1xf32>,
    %c0_28 = arith.constant 0 : index
    %c0_29 = arith.constant 0 : index
    %33 = vector.load %arg8[%c0_28, %c0_29] : memref<8x1xf32, #tpu.memory_space<vmem>>, vector<8x1xf32>
    %cst_30 = arith.constant dense<0.000000e+00> : vector<8xf32>
    %34 = vector.multi_reduction <add>, %8, %cst_30 [1] : vector<8x128xf32> to vector<8xf32>
    %35 = vector.shape_cast %34 : vector<8xf32> to vector<8x1xf32>
    %36 = arith.addf %33, %35 : vector<8x1xf32>
    %c0_31 = arith.constant 0 : index
    %c0_32 = arith.constant 0 : index
    %37 = vector.load %arg8[%c0_31, %c0_32] : memref<8x1xf32, #tpu.memory_space<vmem>>, vector<8x1xf32>
    tpu.vector_store %arg8[%c0_31, %c0_32], %36 {strides = array<i32>} : memref<8x1xf32, #tpu.memory_space<vmem>>, vector<8x1xf32>,
    %c3_i32 = arith.constant 3 : i32
    %38 = arith.cmpi eq, %arg1, %c3_i32 : i32
    %39 = arith.extui %38 : i1 to i32
    %c0_i32_33 = arith.constant 0 : i32
    %40 = arith.cmpi ne, %39, %c0_i32_33 : i32
    scf.if %40 {
      %c0_34 = arith.constant 0 : index
      %c0_35 = arith.constant 0 : index
      %c0_36 = arith.constant 0 : index
      %41 = vector.load %arg5[%c0_34, %c0_35, %c0_36] : memref<3x8x1xf32, #tpu.memory_space<vmem>>, vector<3x8x1xf32>
      %c0_37 = arith.constant 0 : index
      %c0_38 = arith.constant 0 : index
      %c0_39 = arith.constant 0 : index
      %42 = vector.load %arg6[%c0_37, %c0_38, %c0_39] : memref<3x8x1xf32, #tpu.memory_space<vmem>>, vector<3x8x1xf32>
      %43 = math.log %42 : vector<3x8x1xf32>
      %44 = arith.addf %41, %43 : vector<3x8x1xf32>
      %c0_40 = arith.constant 0 : index
      %c0_41 = arith.constant 0 : index
      %45 = vector.load %arg8[%c0_40, %c0_41] : memref<8x1xf32, #tpu.memory_space<vmem>>, vector<8x1xf32>
      %46 = vector.shape_cast %45 : vector<8x1xf32> to vector<1x8x1xf32>
      %c0_42 = arith.constant 0 : index
      %c0_43 = arith.constant 0 : index
      %c0_44 = arith.constant 0 : index
      %47 = vector.load %arg7[%c0_42, %c0_43, %c0_44] : memref<3x8x1xf32, #tpu.memory_space<vmem>>, vector<3x8x1xf32>
      %48 = vector.broadcast %46 : vector<1x8x1xf32> to vector<3x8x1xf32>
      %49 = arith.mulf %44, %48 : vector<3x8x1xf32>
      %50 = arith.subf %47, %49 : vector<3x8x1xf32>
      %51 = vector.shape_cast %50 : vector<3x8x1xf32> to vector<1x3x8x1xf32>
      %cst_45 = arith.constant dense<0.000000e+00> : vector<1xf32>
      %52 = vector.multi_reduction <add>, %51, %cst_45 [1, 2, 3] : vector<1x3x8x1xf32> to vector<1xf32>
      %53 = vector.shape_cast %52 : vector<1xf32> to vector<1x1x1x1xf32>
      %54 = vector.extract %53[0, 0, 0, 0] : f32 from vector<1x1x1x1xf32>
      %cst_46 = arith.constant 0.000000e+00 : f32
      %55 = arith.subf %cst_46, %54 : f32
      %cst_47 = arith.constant 6.250000e-02 : f32
      %56 = arith.mulf %55, %cst_47 : f32
      %57 = vector.broadcast %56 : f32 to vector<8x128xf32>
      %c0_48 = arith.constant 0 : index
      %c0_49 = arith.constant 0 : index
      %c0_50 = arith.constant 0 : index
      %58 = vector.load %arg4[%c0_48, %c0_49, %c0_50] : memref<1x8x128xf32, #tpu.memory_space<vmem>>, vector<1x8x128xf32>
      %59 = vector.shape_cast %58 : vector<1x8x128xf32> to vector<8x128xf32>
      %60 = vector.shape_cast %57 : vector<8x128xf32> to vector<1x8x128xf32>
      tpu.vector_store %arg4[%c0_48, %c0_49, %c0_50], %60 {strides = array<i32>} : memref<1x8x128xf32, #tpu.memory_space<vmem>>, vector<1x8x128xf32>,
    } else {
    }
    return
  }
  func.func @transform_0(%arg0: i32, %arg1: i32) -> (i32, i32, i32) {
    %c0_i32 = arith.constant 0 : i32
    %c0_i32_0 = arith.constant 0 : i32
    return %c0_i32, %arg0, %arg1 : i32, i32, i32
  }
  func.func @transform_1(%arg0: i32, %arg1: i32) -> (i32, i32, i32) {
    %c0_i32 = arith.constant 0 : i32
    %c0_i32_0 = arith.constant 0 : i32
    return %c0_i32, %arg0, %arg1 : i32, i32, i32
  }
  func.func @transform_2(%arg0: i32, %arg1: i32) -> (i32, i32, i32) {
    %c0_i32 = arith.constant 0 : i32
    %c0_i32_0 = arith.constant 0 : i32
    %c0_i32_1 = arith.constant 0 : i32
    return %arg0, %c0_i32, %c0_i32_0 : i32, i32, i32
  }
}

</mosaic_0001>

<llo_original>
// kernel: tpu_custom_call.1
$region0: #{tpu_custom_call.1}
  #allocation0 [shape = 'u32[]', space=smem, size = 0x4, offset = 0x4, fixed_abs, tag = 'smem constant byte address 0x4 - core index']
  #allocation1 [shape = 'u32[144,128]{1,0:T(1,128)}', space=vmem, size = 0x12000, scoped, tag = 'internal scratch']
  #allocation2 [shape = 'f32[3,8,1]{2,1,0:T(8,128)}', space=vmem, size = 0x3000, scoped, tag = 'scratch operand']
  #allocation3 [shape = 'f32[3,8,1]{2,1,0:T(8,128)}', space=vmem, size = 0x3000, scoped, tag = 'scratch operand']
  #allocation4 [shape = 'f32[3,8,1]{2,1,0:T(8,128)}', space=vmem, size = 0x3000, scoped, tag = 'scratch operand']
  #allocation5 [shape = 'f32[8,1]{1,0:T(8,128)}', space=vmem, size = 0x1000, scoped, tag = 'scratch operand']
  %s0 = inlined_call_operand.hbm [shape: bf16[3,16,512], index: 0, kind: input, shape index: {}]
  %s1 = inlined_call_operand.hbm [shape: f32[2,16,512], index: 1, kind: input, shape index: {}]
  %s2 = inlined_call_operand.hbm [shape: f32[2,8,128], index: 2, kind: output, shape index: {}]
  %s3 = sld [smem:[#allocation0]]
  $region57: #{tpu_custom_call.1} parent=0
    _
  %s5 = ssub.s32 1, %s3
  %s6 = scalar_select 0, %s5, %s3
  $region1: #{tpu_custom_call.1} parent=0
    #allocation6 [shape = 'u8[12288]{0}', space=vmem, size = 0x3000, scoped, tag = 'input window, operand 0']
    #allocation7 [shape = 's32[2]{0}', space=sflag, size = 0x8, scoped, tag = 'scoped memory for tpu_custom_call.1']
    #allocation8 [shape = 's32[2]{0}', space=sflag, size = 0x8, scoped, tag = 'scoped memory for tpu_custom_call.1']
    #allocation9 [shape = 'u8[16384]{0}', space=vmem, size = 0x4000, scoped, tag = 'input window, operand 1']
    #allocation10 [shape = 's32[2]{0}', space=sflag, size = 0x8, scoped, tag = 'scoped memory for tpu_custom_call.1']
    #allocation11 [shape = 'u8[8192]{0}', space=vmem, size = 0x2000, scoped, tag = 'output window, operand 0']
    %7 = vsyncpa [#allocation7], 0
    %s8 = scalar_lea.sflag [#allocation7], 1
    %9 = vsyncpa %s8, 0
    %10 = vsyncpa [#allocation10], 0
    %s11 = scalar_lea.sflag [#allocation10], 1
    %12 = vsyncpa %s11, 0
    %13 = vsyncpa [#allocation8], 0
    %s14 = scalar_lea.sflag [#allocation8], 1
    %15 = vsyncpa %s14, 0
    loop: start=0, step=1, limit=10
    $region2: #{tpu_custom_call.1} parent=1 // loop_pre_header
      _
    $region3: #{tpu_custom_call.1} parent=1 // loop_header
      %s17 = sphi 0, %s21
      %p18 = scmp.ge.s32.totalorder %s17, 10
      %s24 = sphi 0, %s36
      %s25 = sphi 0, %s32
      %s26 = sphi 0, %s24
      %s27 = sphi 0, %s25
      %s28 = sphi 0, %s26
      %s29 = sphi 0, %s27
      %s41 = sphi 0, %s43
      %s44 = sphi 0, %s41
      %s45 = sphi 0, %s44
      %s61 = sphi 0, %s45
      %s69 = sphi 0, %s71
      %s72 = sphi 0, %s69
      %s73 = sphi 0, %s72
      %s89 = sphi 0, %s73
      %s95 = sphi 0, %s97
      %s98 = sphi 0, %s95
      %s99 = sphi 0, %s98
      %s115 = sphi 0, %s99
    $region4: #{tpu_custom_call.1} parent=1 // loop_header_branch
      %20 = sbr.rel (%p18) target = $region8
    $region5: #{tpu_custom_call.1} parent=1 // loop_body
      %s22 = ssub.s32 %s17, 1
      %s23 = ssub.s32 %s17, 2
      %s30 = sadd.s32 1, %s25
      %p31 = scmp.ge.s32.totalorder %s30, 4
      %s32 = scalar_select %p31, 0, %s30
      %s33 = sadd.s32 1, %s24
      %s34 = scalar_select %p31, %s33, %s24
      %p35 = scmp.ge.s32.totalorder %s34, 2
      %s36 = scalar_select %p35, 0, %s34
      %s37 = ssub.s32 %s24, %s36
      %s38 = ssub.s32 %s25, %s32
      %s39 = sor.u32 %s37, %s38
      %p40 = scmp.eq.s32.totalorder %s39, 0
      %s42 = sadd.s32 %s41, 1
      %s43 = scalar_select %p40, %s41, %s42
      %p46 = pneg %p40
      %p47 = scmp.eq.s32.totalorder %s17, 7
      %p48 = por %p46, %p47
      %p49 = scmp.ne.s32.totalorder %s41, %s44
      %p50 = scmp.eq.s32.totalorder %s17, 0
      %p51 = por %p49, %p50
      %p52 = scmp.ne.s32.totalorder %s41, %s44
      %p53 = scmp.eq.s32.totalorder %s22, 7
      %p54 = por %p52, %p53
      %p55 = scmp.ne.s32.totalorder %s44, %s45
      %p56 = scmp.eq.s32.totalorder %s22, 0
      %p57 = por %p55, %p56
      %p58 = scmp.ne.s32.totalorder %s44, %s45
      %p59 = scmp.eq.s32.totalorder %s23, 7
      %p60 = por %p58, %p59
      %p62 = scmp.ne.s32.totalorder %s45, %s61
      %p63 = scmp.eq.s32.totalorder %s23, 0
      %p64 = por %p62, %p63
      %s65 = ssub.s32 %s24, %s36
      %s66 = ssub.s32 %s25, %s32
      %s67 = sor.u32 %s65, %s66
      %p68 = scmp.eq.s32.totalorder %s67, 0
      %s70 = sadd.s32 %s69, 1
      %s71 = scalar_select %p68, %s69, %s70
      %p74 = pneg %p68
      %p75 = scmp.eq.s32.totalorder %s17, 7
      %p76 = por %p74, %p75
      %p77 = scmp.ne.s32.totalorder %s69, %s72
      %p78 = scmp.eq.s32.totalorder %s17, 0
      %p79 = por %p77, %p78
      %p80 = scmp.ne.s32.totalorder %s69, %s72
      %p81 = scmp.eq.s32.totalorder %s22, 7
      %p82 = por %p80, %p81
      %p83 = scmp.ne.s32.totalorder %s72, %s73
      %p84 = scmp.eq.s32.totalorder %s22, 0
      %p85 = por %p83, %p84
      %p86 = scmp.ne.s32.totalorder %s72, %s73
      %p87 = scmp.eq.s32.totalorder %s23, 7
      %p88 = por %p86, %p87
      %p90 = scmp.ne.s32.totalorder %s73, %s89
      %p91 = scmp.eq.s32.totalorder %s23, 0
      %p92 = por %p90, %p91
      %s93 = ssub.s32 %s24, %s36
      %p94 = scmp.eq.s32.totalorder %s93, 0
      %s96 = sadd.s32 %s95, 1
      %s97 = scalar_select %p94, %s95, %s96
      %p100 = pneg %p94
      %p101 = scmp.eq.s32.totalorder %s17, 7
      %p102 = por %p100, %p101
      %p103 = scmp.ne.s32.totalorder %s95, %s98
      %p104 = scmp.eq.s32.totalorder %s17, 0
      %p105 = por %p103, %p104
      %p106 = scmp.ne.s32.totalorder %s95, %s98
      %p107 = scmp.eq.s32.totalorder %s22, 7
      %p108 = por %p106, %p107
      %p109 = scmp.ne.s32.totalorder %s98, %s99
      %p110 = scmp.eq.s32.totalorder %s22, 0
      %p111 = por %p109, %p110
      %p112 = scmp.ne.s32.totalorder %s98, %s99
      %p113 = scmp.eq.s32.totalorder %s23, 7
      %p114 = por %p112, %p113
      %p116 = scmp.ne.s32.totalorder %s99, %s115
      %p117 = scmp.eq.s32.totalorder %s23, 0
      %p118 = por %p116, %p117
      %p119 = scmp.le.s32.totalorder 1, %s17
      %p120 = scmp.lt.s32.totalorder %s17, 9
      %p121 = pnand %p119, %p120
      %p122 = pneg %p121
      // Predicated region
      $region9: #{tpu_custom_call.1} parent=5 // pred_check
        _
      $region10: #{tpu_custom_call.1} parent=5 // pred_check_branch
        %124 = sbr.rel (%p121) target = $region12
      $region11: #{tpu_custom_call.1} parent=5 // pred_region
        %s125 = ssub.s32 %s17, 1
      $region12: #{tpu_custom_call.1} parent=5 // pred_fallthru
        _
      %p126 = scmp.lt.s32.totalorder %s17, 8
      // Predicated region
      $region13: #{tpu_custom_call.1} parent=5 // pred_check
        %p127 = pneg %p126
      $region14: #{tpu_custom_call.1} parent=5 // pred_check_branch
        %129 = sbr.rel (%p127) target = $region16
      $region15: #{tpu_custom_call.1} parent=5 // pred_region
        // Predicated region
        $region17: #{tpu_custom_call.1} parent=15 // pred_check
          %p130 = pneg %p51
        $region18: #{tpu_custom_call.1} parent=15 // pred_check_branch
          %132 = sbr.rel (%p130) target = $region20
        $region19: #{tpu_custom_call.1} parent=15 // pred_region
          %s133 = sand.u32 %s41, 1
          %s134 = scalar_lea.sflag [#allocation7], %s133
          %s135 = sand.u32 %s41, 1
          %s136 = smul.addr %s135, 12
          %s137 = scalar_lea.vmem [#allocation6], %s136
          %s139 = ssub.s32 192, 192
          %140 = vsyncadd %s134, %s139
          %s141 = smul.addr %s24, 4
          %s142 = sadd.s32 %s25, %s141
          %s143 = smul.addr %s142, 64
          %s144 = scalar_lea.hbm %s0, %s143
          %s145 = sshll.u32 %s137, 4
          %s146 = int_to_ptr.vmem [resolvable:$true] %s145
          %151 = dma.hbm_to_vmem [thread:$0]  %s144, 192, %s146, %s134, 512, 64, 4
        $region20: #{tpu_custom_call.1} parent=15 // pred_fallthru
          _
        // Predicated region
        $region21: #{tpu_custom_call.1} parent=15 // pred_check
          %p152 = pneg %p79
        $region22: #{tpu_custom_call.1} parent=15 // pred_check_branch
          %154 = sbr.rel (%p152) target = $region24
        $region23: #{tpu_custom_call.1} parent=15 // pred_region
          %s155 = sand.u32 %s69, 1
          %s156 = scalar_lea.sflag [#allocation10], %s155
          %s157 = sand.u32 %s69, 1
          %s158 = smul.addr %s157, 16
          %s159 = scalar_lea.vmem [#allocation9], %s158
          %s161 = ssub.s32 256, 256
          %162 = vsyncadd %s156, %s161
          %s163 = smul.addr %s24, 4
          %s164 = sadd.s32 %s25, %s163
          %s165 = smul.addr %s164, 128
          %s166 = scalar_lea.hbm %s1, %s165
          %s167 = sshll.u32 %s159, 4
          %s168 = int_to_ptr.vmem [resolvable:$true] %s167
          %173 = dma.hbm_to_vmem [thread:$0]  %s166, 256, %s168, %s156, 1024, 128, 8
        $region24: #{tpu_custom_call.1} parent=15 // pred_fallthru
          _
      $region16: #{tpu_custom_call.1} parent=5 // pred_fallthru
        _
      %p174 = scmp.le.s32.totalorder 1, %s17
      %p175 = scmp.lt.s32.totalorder %s17, 9
      %p176 = pnand %p174, %p175
      %p177 = pneg %p176
      // Predicated region
      $region25: #{tpu_custom_call.1} parent=5 // pred_check
        _
      $region26: #{tpu_custom_call.1} parent=5 // pred_check_branch
        %179 = sbr.rel (%p176) target = $region28
      $region27: #{tpu_custom_call.1} parent=5 // pred_region
        %s180 = ssub.s32 %s17, 1
        %s181 = sand.u32 %s44, 1
        %s182 = scalar_lea.sflag [#allocation7], %s181
        %s183 = sand.u32 %s44, 1
        %s184 = smul.addr %s183, 12
        %s185 = scalar_lea.vmem [#allocation6], %s184
        // Predicated region
        $region29: #{tpu_custom_call.1} parent=27 // pred_check
          %p186 = pneg %p57
        $region30: #{tpu_custom_call.1} parent=27 // pred_check_branch
          %188 = sbr.rel (%p186) target = $region32
        $region31: #{tpu_custom_call.1} parent=27 // pred_region
          %189 = dma.done %s182, 192
        $region32: #{tpu_custom_call.1} parent=27 // pred_fallthru
          _
        %s190 = sand.u32 %s72, 1
        %s191 = scalar_lea.sflag [#allocation10], %s190
        %s192 = sand.u32 %s72, 1
        %s193 = smul.addr %s192, 16
        %s194 = scalar_lea.vmem [#allocation9], %s193
        // Predicated region
        $region33: #{tpu_custom_call.1} parent=27 // pred_check
          %p195 = pneg %p85
        $region34: #{tpu_custom_call.1} parent=27 // pred_check_branch
          %197 = sbr.rel (%p195) target = $region36
        $region35: #{tpu_custom_call.1} parent=27 // pred_region
          %198 = dma.done %s191, 256
        $region36: #{tpu_custom_call.1} parent=27 // pred_fallthru
          _
        %s199 = sand.u32 %s44, 1
        %s200 = scalar_lea.sflag [#allocation7], %s199
        %s201 = sand.u32 %s44, 1
        %s202 = smul.addr %s201, 12
        %s203 = scalar_lea.vmem [#allocation6], %s202
        %p204 = pneg %p57
        %p205 = pneg %p54
        %s206 = sand.u32 %s72, 1
        %s207 = scalar_lea.sflag [#allocation10], %s206
        %s208 = sand.u32 %s72, 1
        %s209 = smul.addr %s208, 16
        %s210 = scalar_lea.vmem [#allocation9], %s209
        %p211 = pneg %p85
        %p212 = pneg %p82
        %p213 = pneg %p111
        %p214 = pneg %p108
        %s215 = sand.u32 %s98, 1
        %s216 = scalar_lea.sflag [#allocation8], %s215
        %s217 = sand.u32 %s98, 1
        %s218 = smul.addr %s217, 8
        %s219 = scalar_lea.vmem [#allocation11], %s218
        %p220 = scmp.eq.s32.totalorder %s27, 0
        // Predicated region
        $region37: #{tpu_custom_call.1} parent=27 // pred_check
          %p221 = pneg %p220
        $region38: #{tpu_custom_call.1} parent=27 // pred_check_branch
          %223 = sbr.rel (%p221) target = $region40
        $region39: #{tpu_custom_call.1} parent=27 // pred_region
          %vm224 = vcmask 7168
          %225 = vst.msk [vmem:[#allocation2] sm:$0xff] %vm224, -inf
          %226 = vst.msk [vmem:[#allocation2 + $0x8] sm:$0xff] %vm224, -inf
          %227 = vst.msk [vmem:[#allocation2 + $0x10] sm:$0xff] %vm224, -inf
          %228 = vst.msk [vmem:[#allocation3] sm:$0xff] %vm224, 0.0
          %229 = vst.msk [vmem:[#allocation3 + $0x8] sm:$0xff] %vm224, 0.0
          %230 = vst.msk [vmem:[#allocation3 + $0x10] sm:$0xff] %vm224, 0.0
          %231 = vst.msk [vmem:[#allocation4] sm:$0xff] %vm224, 0.0
          %232 = vst.msk [vmem:[#allocation4 + $0x8] sm:$0xff] %vm224, 0.0
          %233 = vst.msk [vmem:[#allocation4 + $0x10] sm:$0xff] %vm224, 0.0
          %234 = vst.msk [vmem:[#allocation5] sm:$0xff] %vm224, 0.0
        $region40: #{tpu_custom_call.1} parent=27 // pred_fallthru
          _
        %v235 = vld [vmem:[%s185] sm:$0xf]
        %v236 = vld [vmem:[%s185 + $0x4] sm:$0xf]
        %v237 = vld [vmem:[%s185 + $0x8] sm:$0xf]
        %v238 = vunpack.c.l.bf16 %v235
        %v239 = vunpack.c.l.bf16 %v236
        %v240 = vunpack.c.l.bf16 %v237
        %v241 = vmul.f32 %v238, 10.0
        %v242 = vmul.f32 %v239, 10.0
        %v243 = vmul.f32 %v240, 10.0
        %v244 = vld [vmem:[%s194] sm:$0xff]
        %v245 = vld [vmem:[%s194 + $0x8] sm:$0xff]
        %v246 = vadd.f32 %v244, %v245
        %v247 = vld [vmem:[#allocation2] sm:$0xff]
        %v248 = vld [vmem:[#allocation2 + $0x8] sm:$0xff]
        %v249 = vld [vmem:[#allocation2 + $0x10] sm:$0xff]
        %250 = vmax.xlane.f32.xlu0 %v241
        %v251 = vpop.xlane.xlu0 %250
        %252 = vmax.xlane.f32.xlu0 %v242
        %v253 = vpop.xlane.xlu0 %252
        %254 = vmax.xlane.f32.xlu0 %v243
        %v255 = vpop.xlane.xlu0 %254
        %v256 = vmax.f32 %v247, %v251
        %v257 = vmax.f32 %v248, %v253
        %v258 = vmax.f32 %v249, %v255
        %v259 = vld [vmem:[#allocation3] sm:$0xff]
        %v260 = vld [vmem:[#allocation3 + $0x8] sm:$0xff]
        %v261 = vld [vmem:[#allocation3 + $0x10] sm:$0xff]
        %v262 = vsub.f32 %v247, %v256
        %v263 = vsub.f32 %v248, %v257
        %v264 = vsub.f32 %v249, %v258
        %v265 = vmul.f32 %v262, 1.442695
        %v266 = vpow.pop %v265
        %v267 = vmul.f32 %v263, 1.442695
        %v268 = vpow.pop %v267
        %v269 = vmul.f32 %v264, 1.442695
        %v270 = vpow.pop %v269
        %v271 = vmul.f32 %v259, %v266
        %v272 = vmul.f32 %v260, %v268
        %v273 = vmul.f32 %v261, %v270
        %275 = vset.pattern.permute.xlu0 0
        %276 = vperm.xlu0 %275, %v256
        %v277 = vpop.permute.xlu0 %276
        %280 = vset.pattern.permute.xlu0 0
        %281 = vperm.xlu0 %280, %v257
        %v282 = vpop.permute.xlu0 %281
        %285 = vset.pattern.permute.xlu0 0
        %286 = vperm.xlu0 %285, %v258
        %v287 = vpop.permute.xlu0 %286
        %v289 = vsub.f32 %v241, %v277
        %v290 = vsub.f32 %v242, %v282
        %v291 = vsub.f32 %v243, %v287
        %v292 = vmul.f32 %v289, 1.442695
        %v293 = vpow.pop %v292
        %v294 = vmul.f32 %v290, 1.442695
        %v295 = vpow.pop %v294
        %v296 = vmul.f32 %v291, 1.442695
        %v297 = vpow.pop %v296
        %298 = vadd.xlane.f32.xlu0 %v293
        %v299 = vpop.xlane.xlu0 %298
        %300 = vadd.xlane.f32.xlu0 %v295
        %v301 = vpop.xlane.xlu0 %300
        %302 = vadd.xlane.f32.xlu0 %v297
        %v303 = vpop.xlane.xlu0 %302
        %v304 = vadd.f32 %v271, %v299
        %v305 = vadd.f32 %v272, %v301
        %v306 = vadd.f32 %v273, %v303
        %vm307 = vcmask 7168
        %308 = vst.msk [vmem:[#allocation3] sm:$0xff] %vm307, %v304
        %309 = vst.msk [vmem:[#allocation3 + $0x8] sm:$0xff] %vm307, %v305
        %310 = vst.msk [vmem:[#allocation3 + $0x10] sm:$0xff] %vm307, %v306
        %311 = vst.msk [vmem:[#allocation2] sm:$0xff] %vm307, %v256
        %312 = vst.msk [vmem:[#allocation2 + $0x8] sm:$0xff] %vm307, %v257
        %313 = vst.msk [vmem:[#allocation2 + $0x10] sm:$0xff] %vm307, %v258
        %v314 = vld [vmem:[#allocation4] sm:$0xff]
        %v315 = vld [vmem:[#allocation4 + $0x8] sm:$0xff]
        %v316 = vld [vmem:[#allocation4 + $0x10] sm:$0xff]
        %v317 = vmul.f32 %v246, %v241
        %v318 = vmul.f32 %v246, %v242
        %v319 = vmul.f32 %v246, %v243
        %320 = vadd.xlane.f32.xlu0 %v317
        %v321 = vpop.xlane.xlu0 %320
        %322 = vadd.xlane.f32.xlu0 %v318
        %v323 = vpop.xlane.xlu0 %322
        %324 = vadd.xlane.f32.xlu0 %v319
        %v325 = vpop.xlane.xlu0 %324
        %v326 = vadd.f32 %v314, %v321
        %v327 = vadd.f32 %v315, %v323
        %v328 = vadd.f32 %v316, %v325
        %329 = vst.msk [vmem:[#allocation4] sm:$0xff] %vm307, %v326
        %330 = vst.msk [vmem:[#allocation4 + $0x8] sm:$0xff] %vm307, %v327
        %331 = vst.msk [vmem:[#allocation4 + $0x10] sm:$0xff] %vm307, %v328
        %v332 = vld [vmem:[#allocation5] sm:$0xff]
        %333 = vadd.xlane.f32.xlu0 %v246
        %v334 = vpop.xlane.xlu0 %333
        %v335 = vadd.f32 %v332, %v334
        %336 = vst.msk [vmem:[#allocation5] sm:$0xff] %vm307, %v335
        %p337 = scmp.eq.s32.totalorder %s27, 3
        // Predicated region
        $region41: #{tpu_custom_call.1} parent=27 // pred_check
          %p338 = pneg %p337
        $region42: #{tpu_custom_call.1} parent=27 // pred_check_branch
          %340 = sbr.rel (%p338) target = $region44
        $region43: #{tpu_custom_call.1} parent=27 // pred_region
          %v341 = vld [vmem:[#allocation2] sm:$0xff]
          %v342 = vld [vmem:[#allocation2 + $0x8] sm:$0xff]
          %v343 = vld [vmem:[#allocation2 + $0x10] sm:$0xff]
          %v344 = vld [vmem:[#allocation3] sm:$0xff]
          %v345 = vld [vmem:[#allocation3 + $0x8] sm:$0xff]
          %v346 = vld [vmem:[#allocation3 + $0x10] sm:$0xff]
          %v347 = vlog2.pop %v344
          %v348 = vmul.f32 %v347, 0.6931472
          %v349 = vlog2.pop %v345
          %v350 = vmul.f32 %v349, 0.6931472
          %v351 = vlog2.pop %v346
          %v352 = vmul.f32 %v351, 0.6931472
          %v353 = vadd.f32 %v341, %v348
          %v354 = vadd.f32 %v342, %v350
          %v355 = vadd.f32 %v343, %v352
          %v356 = vld [vmem:[#allocation5] sm:$0xff]
          %v357 = vld [vmem:[#allocation4] sm:$0xff]
          %v358 = vld [vmem:[#allocation4 + $0x8] sm:$0xff]
          %v359 = vld [vmem:[#allocation4 + $0x10] sm:$0xff]
          %v360 = vmul.f32 %v353, %v356
          %v361 = vmul.f32 %v354, %v356
          %v362 = vmul.f32 %v355, %v356
          %v363 = vsub.f32 %v357, %v360
          %v364 = vsub.f32 %v358, %v361
          %v365 = vsub.f32 %v359, %v362
          %v366 = vsel %vm307, %v363, 0.0
          %v367 = vsel %vm307, %v364, 0.0
          %v368 = vadd.f32 %v366, %v367
          %v369 = vsel %vm307, %v365, 0.0
          %v370 = vadd.f32 %v368, %v369
          %371 = vadd.xlane.f32.xlu0 %v370
          %v372 = vpop.xlane.xlu0 %371
          %v373 = vrot.slane %v372, 4
          %v374 = vadd.f32 %v372, %v373
          %v375 = vrot.slane %v374, 2
          %v376 = vadd.f32 %v374, %v375
          %v377 = vrot.slane %v376, 1
          %v378 = vadd.f32 %v376, %v377
          %s379 = vtos %v378
          %s380 = ssub.f32 0.0, %s379
          %s381 = smul.f32 %s380, 0.0625
          %v382 = vstv %s381
          %383 = vst [vmem:[%s219] sm:$0xff] %v382
        $region44: #{tpu_custom_call.1} parent=27 // pred_fallthru
          _
        %s384 = sand.u32 %s98, 1
        %s385 = scalar_lea.sflag [#allocation8], %s384
        %s386 = sand.u32 %s98, 1
        %s387 = smul.addr %s386, 8
        %s388 = scalar_lea.vmem [#allocation11], %s387
        // Predicated region
        $region45: #{tpu_custom_call.1} parent=27 // pred_check
          %p389 = pneg %p108
        $region46: #{tpu_custom_call.1} parent=27 // pred_check_branch
          %391 = sbr.rel (%p389) target = $region48
        $region47: #{tpu_custom_call.1} parent=27 // pred_region
          %s393 = ssub.s32 128, 128
          %394 = vsyncadd %s385, %s393
          %s395 = smul.addr %s26, 128
          %s396 = scalar_lea.hbm %s2, %s395
          %s398 = sshll.u32 %s388, 4
          %s399 = int_to_ptr.vmem [resolvable:$true] %s398
          %401 = dma.vmem_to_hbm [thread:$0]  %s399, 128, %s396, %s385
        $region48: #{tpu_custom_call.1} parent=27 // pred_fallthru
          _
      $region28: #{tpu_custom_call.1} parent=5 // pred_fallthru
        _
      %p402 = scmp.le.s32.totalorder 2, %s17
      // Predicated region
      $region49: #{tpu_custom_call.1} parent=5 // pred_check
        %p403 = pneg %p402
      $region50: #{tpu_custom_call.1} parent=5 // pred_check_branch
        %405 = sbr.rel (%p403) target = $region52
      $region51: #{tpu_custom_call.1} parent=5 // pred_region
        %s406 = ssub.s32 %s17, 2
        // Predicated region
        $region53: #{tpu_custom_call.1} parent=51 // pred_check
          %p407 = pneg %p114
        $region54: #{tpu_custom_call.1} parent=51 // pred_check_branch
          %409 = sbr.rel (%p407) target = $region56
        $region55: #{tpu_custom_call.1} parent=51 // pred_region
          %s410 = sand.u32 %s99, 1
          %s411 = scalar_lea.sflag [#allocation8], %s410
          %s412 = sand.u32 %s99, 1
          %s413 = smul.addr %s412, 8
          %s414 = scalar_lea.vmem [#allocation11], %s413
          %415 = dma.done %s411, 128
        $region56: #{tpu_custom_call.1} parent=51 // pred_fallthru
          _
      $region52: #{tpu_custom_call.1} parent=5 // pred_fallthru
        _
    $region6: #{tpu_custom_call.1} parent=1 // loop_footer
      %s21 = sadd.s32 1, %s17
    $region7: #{tpu_custom_call.1} parent=1 // loop_footer_branch
      %16 = sbr.rel target = $region3
    $region8: #{tpu_custom_call.1} parent=1 // loop_exit
      _
    %416 = vsyncpa [#allocation7], 1
    %s417 = scalar_lea.sflag [#allocation7], 1
    %418 = vsyncpa %s417, 1
    %419 = vsyncpa [#allocation10], 1
    %s420 = scalar_lea.sflag [#allocation10], 1
    %421 = vsyncpa %s420, 1
    %422 = vsyncpa [#allocation8], 1
    %s423 = scalar_lea.sflag [#allocation8], 1
    %424 = vsyncpa %s423, 1

</llo_original>
